<compile_context>
chip_gen: v6e
topology: v6e:2x2x1
jax: 0.10.0
libtpu: 0.0.40
codegen_flags: <defaults>
</compile_context>

<pallas_src>
import numpy as np
import jax
import jax.numpy as jnp
from jax import lax
from jax.experimental import pallas as pl
from jax.experimental.pallas import tpu as pltpu


def _make_kernel(N, tile, tiles_per_chunk):
    """Kernel closure over static shape info (needed for the tail-row mask)."""

    def kernel(x_ref, seg_ref, o_ref):
        # x_ref  : (tile, F) f32   node features (natural layout, cast in-kernel)
        # seg_ref: (1, tile) int32 graph id per node (-1 for padding)
        # o_ref  : (G, F)    f32   per-chunk segment sums (resident across k)
        c = pl.program_id(0)
        k = pl.program_id(1)

        @pl.when(k == 0)
        def _():
            o_ref[...] = jnp.zeros_like(o_ref)

        G = o_ref.shape[0]

        # Zero rows past the true node count N: the last tile may overrun the
        # un-padded feature array and Pallas fills partial blocks with
        # undefined values (which must not reach the MXU, 0 * NaN == NaN).
        node_start = (c * tiles_per_chunk + k) * tile
        row = lax.broadcasted_iota(jnp.int32, (tile, 1), 0)
        valid = row < (N - node_start)
        x = jnp.where(valid, x_ref[...], 0.0).astype(jnp.bfloat16)      # (tile, F)

        # Pooling one-hot built on the fly ((G,1) iota vs (1,tile) seg row);
        # padded / garbage seg rows are harmless because x is already zeroed.
        gids = lax.broadcasted_iota(jnp.int32, (G, 1), 0)
        onehot = (seg_ref[...] == gids).astype(jnp.bfloat16)            # (G, tile)

        # Per-graph feature segment-sum, canonical MXU contraction:
        # o(G, F) += onehot(G, tile) . x(tile, F), f32 accumulation.
        o_ref[...] += lax.dot_general(
            onehot, x,
            dimension_numbers=(((1,), (0,)), ((), ())),
            preferred_element_type=jnp.float32)

    return kernel


def _round_up(x, m):
    return ((x + m - 1) // m) * m


def mesh_graph_reader(patch_feats, seg_ids, counts, w, b, *,
                      chunks=1, vmem_block_bytes=4 << 20):
    """patch_feats: (N, F)  seg_ids: (N,) int  counts: (G,) int
       w: (F, E)  b: (1, E)  ->  (G, E) per-graph mean embedding.

    chunks=1 for single-TensorCore parts (v5e/v6e); set chunks=2 on v7x to let
    the "parallel" chunk axis shard across the two TensorCores.
    """
    N, F = patch_feats.shape
    G = int(counts.shape[0])

    # Tile sized by VMEM footprint of one feature block (~vmem_block_bytes,
    # double-buffered this stays well under the scoped-VMEM default on all of
    # v5e/v6e/v7x).  Multiple of 128 so the seg row's lane axis tiles cleanly.
    bytes_per_node = F * patch_feats.dtype.itemsize
    max_tile = max(128, (vmem_block_bytes // bytes_per_node) // 128 * 128)
    tile = int(min(max_tile, _round_up(pl.cdiv(N, chunks), 128)))
    tiles_per_chunk = int(pl.cdiv(N, chunks * tile))
    n_pad = chunks * tiles_per_chunk * tile

    # Only the 4 B/node segment-id row gets a padded copy (-1 == "no graph");
    # the feature matrix is passed through untouched.
    seg = jnp.full((1, n_pad), -1, jnp.int32).at[0, :N].set(
        seg_ids.astype(jnp.int32))

    partial_sums = pl.pallas_call(
        _make_kernel(N, tile, tiles_per_chunk),
        out_shape=jax.ShapeDtypeStruct((chunks, G, F), jnp.float32),
        grid_spec=pltpu.PrefetchScalarGridSpec(
            num_scalar_prefetch=0,
            grid=(chunks, tiles_per_chunk),
            in_specs=[
                # node-feature tile in natural (tile, F) layout
                pl.BlockSpec((tile, F),
                             lambda c, k: (c * tiles_per_chunk + k, 0)),
                # segment ids for the same nodes
                pl.BlockSpec((1, tile),
                             lambda c, k: (0, c * tiles_per_chunk + k)),
            ],
            # Output block resident across the node-tile (reduction) axis.
            out_specs=pl.BlockSpec((None, G, F), lambda c, k: (c, 0, 0)),
        ),
        compiler_params=pltpu.CompilerParams(
            # chunk axis parallel (2 TCs on v7x), node tiles = reduction axis
            dimension_semantics=("parallel", "arbitrary"),
        ),
    )(patch_feats, seg)

    # Tiny XLA epilogue: combine per-chunk partials, per-graph mean (guarding
    # empty graphs), then the hoisted embedder matmul + bias exactly once
    # (mean_nodes(x @ W + b) == segment_mean(x) @ W + b by linearity).
    counts_f = counts.astype(jnp.float32)
    inv_counts = jnp.where(counts_f > 0, 1.0 / jnp.maximum(counts_f, 1.0), 0.0)
    mean_gf = partial_sums.sum(axis=0) * inv_counts[:, None]            # (G, F)
    return mean_gf @ w.astype(jnp.float32) + b.astype(jnp.float32)      # (G, E)


if __name__ == "__main__":
    # Small synthetic batched mesh-graph: 4 graphs, ragged node counts (sum=1000,
    # deliberately not tile-aligned to exercise the tail-mask path), F=16
    # aggregated feats per spider patch, embed_dim E=32.
    counts_np = np.array([300, 180, 350, 170], dtype=np.int32)
    G = counts_np.shape[0]
    N = int(counts_np.sum())
    F, E = 16, 32
    seg_np = np.repeat(np.arange(G, dtype=np.int32), counts_np)   # DGL batch order

    key = jax.random.PRNGKey(0)
    k_x, k_w, k_b = jax.random.split(key, 3)
    patch_feats = jax.random.normal(k_x, (N, F), dtype=jnp.float32)  # ndata['aggregated_feats']
    w = jax.random.normal(k_w, (F, E), dtype=jnp.float32) * 0.1      # embedder weight
    b = jax.random.normal(k_b, (1, E), dtype=jnp.float32) * 0.1      # embedder bias

    out = mesh_graph_reader(patch_feats, jnp.asarray(seg_np),
                            jnp.asarray(counts_np), w, b)
    out = jax.block_until_ready(out)

    # Pure-JAX/numpy f32 reference: embed every patch, then per-graph mean
    # (== dgl.mean_nodes).  Tolerance accounts for the in-kernel bf16 feature
    # cast (documented contract change vs. the f32 PyTorch/DGL reference).
    emb_ref = np.asarray(patch_feats) @ np.asarray(w) + np.asarray(b)   # (N, E)
    onehot = (seg_np[None, :] == np.arange(G)[:, None]).astype(np.float32)
    ref = (onehot / counts_np[:, None]) @ emb_ref                       # (G, E)

    assert out.shape == (G, E)
    np.testing.assert_allclose(np.asarray(out), ref, rtol=2e-2, atol=5e-3)

    # TODO(synk): spider_patch_embedder is an arbitrary external nn.Module (and
    # GraphDataLoader re-batching is host-side plumbing); only the (N, embed_dim)
    # linear-embedder contract is reproduced here.
    print("KERNEL_OK")
</pallas_src>

<mosaic_0001>
module attributes {stable_mosaic.version = 11 : i64} {
  func.func @kernel(%arg0: i32, %arg1: i32, %arg2: memref<1024x16xf32, #tpu.memory_space<vmem>>, %arg3: memref<1x1024xi32, #tpu.memory_space<vmem>>, %arg4: memref<1x4x16xf32, #tpu.memory_space<vmem>>) attributes {dimension_semantics = [#tpu.dimension_semantics<parallel>, #tpu.dimension_semantics<arbitrary>], iteration_bounds = array<i64: 1, 1>, scalar_prefetch = 0 : i64, scratch_operands = 0 : i64, tpu.core_type = #tpu.core_type<tc>, window_params = [{transform_indices = @transform_0, window_bounds = array<i64: 1024, 16>}, {transform_indices = @transform_1, window_bounds = array<i64: 1, 1024>}, {transform_indices = @transform_2, window_bounds = array<i64: 1, 4, 16>}]} {
    %c0_i32 = arith.constant 0 : i32
    %0 = arith.cmpi eq, %arg1, %c0_i32 : i32
    %1 = arith.extui %0 : i1 to i32
    %c0_i32_0 = arith.constant 0 : i32
    %2 = arith.cmpi ne, %1, %c0_i32_0 : i32
    scf.if %2 {
      %cst_11 = arith.constant 0.000000e+00 : f32
      %31 = vector.broadcast %cst_11 : f32 to vector<4x16xf32>
      %c0_12 = arith.constant 0 : index
      %c0_13 = arith.constant 0 : index
      %c0_14 = arith.constant 0 : index
      %32 = vector.load %arg4[%c0_12, %c0_13, %c0_14] : memref<1x4x16xf32, #tpu.memory_space<vmem>>, vector<1x4x16xf32>
      %33 = vector.shape_cast %32 : vector<1x4x16xf32> to vector<4x16xf32>
      %34 = vector.shape_cast %31 : vector<4x16xf32> to vector<1x4x16xf32>
      tpu.vector_store %arg4[%c0_12, %c0_13, %c0_14], %34 {strides = array<i32>} : memref<1x4x16xf32, #tpu.memory_space<vmem>>, vector<1x4x16xf32>,
    } else {
    }
    %c1_i32 = arith.constant 1 : i32
    %3 = arith.muli %arg0, %c1_i32 : i32
    %4 = arith.addi %3, %arg1 : i32
    %c1024_i32 = arith.constant 1024 : i32
    %5 = arith.muli %4, %c1024_i32 : i32
    %6 = tpu.iota {dimensions = array<i32: 0>} : vector<1024x1xi32>
    %c1000_i32 = arith.constant 1000 : i32
    %7 = arith.subi %c1000_i32, %5 : i32
    %8 = vector.broadcast %7 : i32 to vector<1024x1xi32>
    %9 = arith.cmpi slt, %6, %8 : vector<1024x1xi32>
    %c0 = arith.constant 0 : index
    %c0_1 = arith.constant 0 : index
    %10 = vector.load %arg2[%c0, %c0_1] : memref<1024x16xf32, #tpu.memory_space<vmem>>, vector<1024x16xf32>
    %cst = arith.constant 0.000000e+00 : f32
    %11 = vector.shape_cast %9 : vector<1024x1xi1> to vector<1024x1xi1>
    %12 = vector.broadcast %11 : vector<1024x1xi1> to vector<1024x16xi1>
    %13 = vector.broadcast %cst : f32 to vector<1024x16xf32>
    %14 = arith.select %12, %10, %13 : vector<1024x16xi1>, vector<1024x16xf32>
    %15 = arith.truncf %14 : vector<1024x16xf32> to vector<1024x16xbf16>
    %16 = tpu.iota {dimensions = array<i32: 0>} : vector<4x1xi32>
    %c0_2 = arith.constant 0 : index
    %c0_3 = arith.constant 0 : index
    %17 = vector.load %arg3[%c0_2, %c0_3] : memref<1x1024xi32, #tpu.memory_space<vmem>>, vector<1x1024xi32>
    %18 = vector.broadcast %17 : vector<1x1024xi32> to vector<4x1024xi32>
    %19 = vector.broadcast %16 : vector<4x1xi32> to vector<4x1024xi32>
    %20 = arith.cmpi eq, %18, %19 : vector<4x1024xi32>
    %21 = arith.extui %20 : vector<4x1024xi1> to vector<4x1024xi32>
    %22 = arith.sitofp %21 : vector<4x1024xi32> to vector<4x1024xf32>
    %23 = arith.truncf %22 : vector<4x1024xf32> to vector<4x1024xbf16>
    %c0_4 = arith.constant 0 : index
    %c0_5 = arith.constant 0 : index
    %c0_6 = arith.constant 0 : index
    %24 = vector.load %arg4[%c0_4, %c0_5, %c0_6] : memref<1x4x16xf32, #tpu.memory_space<vmem>>, vector<1x4x16xf32>
    %25 = vector.shape_cast %24 : vector<1x4x16xf32> to vector<4x16xf32>
    %cst_7 = arith.constant dense<0.000000e+00> : vector<4x16xf32>
    %26 = tpu.matmul %23, %15, %cst_7 {dimension_numbers = #tpu.dot_dimension_numbers<[1], [0], [0], [1], [0, 0, 1, 1], [], []>} : vector<4x1024xbf16>, vector<1024x16xbf16>, vector<4x16xf32> -> vector<4x16xf32>
    %27 = arith.addf %25, %26 : vector<4x16xf32>
    %c0_8 = arith.constant 0 : index
    %c0_9 = arith.constant 0 : index
    %c0_10 = arith.constant 0 : index
    %28 = vector.load %arg4[%c0_8, %c0_9, %c0_10] : memref<1x4x16xf32, #tpu.memory_space<vmem>>, vector<1x4x16xf32>
    %29 = vector.shape_cast %28 : vector<1x4x16xf32> to vector<4x16xf32>
    %30 = vector.shape_cast %27 : vector<4x16xf32> to vector<1x4x16xf32>
    tpu.vector_store %arg4[%c0_8, %c0_9, %c0_10], %30 {strides = array<i32>} : memref<1x4x16xf32, #tpu.memory_space<vmem>>, vector<1x4x16xf32>,
    return
  }
  func.func @transform_0(%arg0: i32, %arg1: i32) -> (i32, i32) {
    %c1_i32 = arith.constant 1 : i32
    %0 = arith.muli %arg0, %c1_i32 : i32
    %1 = arith.addi %0, %arg1 : i32
    %c0_i32 = arith.constant 0 : i32
    %c0_i32_0 = arith.constant 0 : i32
    return %1, %c0_i32 : i32, i32
  }
  func.func @transform_1(%arg0: i32, %arg1: i32) -> (i32, i32) {
    %c1_i32 = arith.constant 1 : i32
    %0 = arith.muli %arg0, %c1_i32 : i32
    %1 = arith.addi %0, %arg1 : i32
    %c0_i32 = arith.constant 0 : i32
    %c0_i32_0 = arith.constant 0 : i32
    return %c0_i32, %1 : i32, i32
  }
  func.func @transform_2(%arg0: i32, %arg1: i32) -> (i32, i32, i32) {
    %c0_i32 = arith.constant 0 : i32
    %c0_i32_0 = arith.constant 0 : i32
    %c0_i32_1 = arith.constant 0 : i32
    return %arg0, %c0_i32, %c0_i32_0 : i32, i32, i32
  }
}

</mosaic_0001>

<llo_original>
// kernel: tpu_custom_call.1
$region0: #{tpu_custom_call.1}
  #allocation0 [shape = 'u32[]', space=smem, size = 0x4, offset = 0x4, fixed_abs, tag = 'smem constant byte address 0x4 - core index']
  #allocation1 [shape = 'u32[144,128]{1,0:T(1,128)}', space=vmem, size = 0x12000, scoped, tag = 'internal scratch']
  %s0 = inlined_call_operand.vmem [shape: f32[1000,16], index: 0, kind: input, shape index: {}]
  %s1 = inlined_call_operand.vmem [shape: s32[1,1024], index: 1, kind: input, shape index: {}]
  %s2 = inlined_call_operand.hbm [shape: f32[1,4,16], index: 2, kind: output, shape index: {}]
  %s3 = sld [smem:[#allocation0]]
  $region22: #{tpu_custom_call.1} parent=0
    _
  %s5 = ssub.s32 1, %s3
  %s6 = scalar_select 0, %s5, %s3
  $region1: #{tpu_custom_call.1} parent=0
    #allocation2 [shape = 'u8[2048]{0}', space=vmem, size = 0x800, scoped, tag = 'output window, operand 0, single buffered']
    #allocation3 [shape = 's32[1]{0}', space=sflag, size = 0x4, scoped, tag = 'scoped memory for tpu_custom_call.1']
    %7 = vsyncpa [#allocation3], 0
    // Predicated region
    $region2: #{tpu_custom_call.1} parent=1 // pred_check
      _
    $region3: #{tpu_custom_call.1} parent=1 // pred_check_branch
      %9 = sbr.rel (0) target = $region5
    $region4: #{tpu_custom_call.1} parent=1 // pred_region
      %s10 = sadd.s32 0, 0
      %s11 = smul.u32 128, %s10
      %s12 = ssub.s32 125, %s11
      %s13 = smul.u32 128, %s12
      %p14 = scmp.lt.s32.totalorder %s11, 124
      %s15 = scalar_select %p14, %s11, 124
      %s16 = smul.addr %s15, 8
      %s17 = scalar_lea.vmem %s0, %s16
      %s18 = sadd.s32 0, 0
      %s19 = smul.u32 128, %s18
      %s20 = ssub.s32 125, %s19
      %s21 = smul.u32 128, %s20
    $region5: #{tpu_custom_call.1} parent=1 // pred_fallthru
      _
    // Predicated region
    $region6: #{tpu_custom_call.1} parent=1 // pred_check
      _
    $region7: #{tpu_custom_call.1} parent=1 // pred_check_branch
      %23 = sbr.rel (0) target = $region9
    $region8: #{tpu_custom_call.1} parent=1 // pred_region
      %s24 = sadd.s32 0, 0
      %s25 = smul.u32 8, %s24
      %p26 = scmp.lt.s32.totalorder %s25, 7
      %s27 = scalar_select %p26, %s25, 7
      %s28 = scalar_lea.vmem %s1, %s27
      %s29 = sadd.s32 0, 0
      %s30 = smul.u32 8, %s29
    $region9: #{tpu_custom_call.1} parent=1 // pred_fallthru
      _
    %s31 = sadd.s32 0, 0
    %s32 = smul.u32 128, %s31
    %s33 = ssub.s32 125, %s32
    %s34 = smul.u32 128, %s33
    %p35 = scmp.lt.s32.totalorder %s32, 124
    %s36 = scalar_select %p35, %s32, 124
    %s37 = smul.addr %s36, 8
    %s38 = scalar_lea.vmem %s0, %s37
    %s39 = sadd.s32 0, 0
    %s40 = smul.u32 8, %s39
    %p41 = scmp.lt.s32.totalorder %s40, 7
    %s42 = scalar_select %p41, %s40, 7
    %s43 = scalar_lea.vmem %s1, %s42
    %s44 = sadd.s32 0, 0
    %s45 = smul.u32 128, %s44
    %s46 = ssub.s32 125, %s45
    %s47 = smul.u32 128, %s46
    %p48 = scmp.lt.s32.totalorder %s45, 124
    %s49 = scalar_select %p48, %s45, 124
    %s50 = smul.addr %s49, 8
    %s51 = scalar_lea.vmem %s0, %s50
    %s52 = sadd.s32 0, 0
    %s53 = smul.u32 128, %s52
    %s54 = ssub.s32 125, %s53
    %s55 = smul.u32 128, %s54
    %s56 = sadd.s32 0, 0
    %s57 = smul.u32 8, %s56
    %p58 = scmp.lt.s32.totalorder %s57, 7
    %s59 = scalar_select %p58, %s57, 7
    %s60 = scalar_lea.vmem %s1, %s59
    %s61 = sadd.s32 0, 0
    %s62 = smul.u32 8, %s61
    %p64 = scmp.eq.s32.totalorder 0, 0
    // Predicated region
    $region10: #{tpu_custom_call.1} parent=1 // pred_check
      %p65 = pneg %p64
    $region11: #{tpu_custom_call.1} parent=1 // pred_check_branch
      %67 = sbr.rel (%p65) target = $region13
    $region12: #{tpu_custom_call.1} parent=1 // pred_region
      %vm68 = vcmask 125952
      %69 = vst.msk [vmem:[#allocation2] sm:$0xf] %vm68, 0.0
    $region13: #{tpu_custom_call.1} parent=1 // pred_fallthru
      _
    %s70 = sadd.s32 0, 0
    %s71 = smul.u32 %s70, 1024
    %v72 = vlaneseq
    %v73 = vshrl.u32 %v72, 7
    %v74 = vadd.s32 %v73, 8
    %v75 = vadd.s32 %v73, 16
    %v76 = vadd.s32 %v73, 24
    %v77 = vadd.s32 %v73, 32
    %v78 = vadd.s32 %v73, 40
    %v79 = vadd.s32 %v73, 48
    %v80 = vadd.s32 %v73, 56
    %v81 = vadd.s32 %v73, 64
    %v82 = vadd.s32 %v73, 72
    %v83 = vadd.s32 %v73, 80
    %v84 = vadd.s32 %v73, 88
    %v85 = vadd.s32 %v73, 96
    %v86 = vadd.s32 %v73, 104
    %v87 = vadd.s32 %v73, 112
    %v88 = vadd.s32 %v73, 120
    %v89 = vadd.s32 %v73, 128
    %v90 = vadd.s32 %v73, 136
    %v91 = vadd.s32 %v73, 144
    %v92 = vadd.s32 %v73, 152
    %v93 = vadd.s32 %v73, 160
    %v94 = vadd.s32 %v73, 168
    %v95 = vadd.s32 %v73, 176
    %v96 = vadd.s32 %v73, 184
    %v97 = vadd.s32 %v73, 192
    %v98 = vadd.s32 %v73, 200
    %v99 = vadd.s32 %v73, 208
    %v100 = vadd.s32 %v73, 216
    %v101 = vadd.s32 %v73, 224
    %v102 = vadd.s32 %v73, 232
    %v103 = vadd.s32 %v73, 240
    %v104 = vadd.s32 %v73, 248
    %v105 = vadd.s32 %v73, 256
    %v106 = vadd.s32 %v73, 264
    %v107 = vadd.s32 %v73, 272
    %v108 = vadd.s32 %v73, 280
    %v109 = vadd.s32 %v73, 288
    %v110 = vadd.s32 %v73, 296
    %v111 = vadd.s32 %v73, 304
    %v112 = vadd.s32 %v73, 312
    %v113 = vadd.s32 %v73, 320
    %v114 = vadd.s32 %v73, 328
    %v115 = vadd.s32 %v73, 336
    %v116 = vadd.s32 %v73, 344
    %v117 = vadd.s32 %v73, 352
    %v118 = vadd.s32 %v73, 360
    %v119 = vadd.s32 %v73, 368
    %v120 = vadd.s32 %v73, 376
    %v121 = vadd.s32 %v73, 384
    %v122 = vadd.s32 %v73, 392
    %v123 = vadd.s32 %v73, 400
    %v124 = vadd.s32 %v73, 408
    %v125 = vadd.s32 %v73, 416
    %v126 = vadd.s32 %v73, 424
    %v127 = vadd.s32 %v73, 432
    %v128 = vadd.s32 %v73, 440
    %v129 = vadd.s32 %v73, 448
    %v130 = vadd.s32 %v73, 456
    %v131 = vadd.s32 %v73, 464
    %v132 = vadd.s32 %v73, 472
    %v133 = vadd.s32 %v73, 480
    %v134 = vadd.s32 %v73, 488
    %v135 = vadd.s32 %v73, 496
    %v136 = vadd.s32 %v73, 504
    %v137 = vadd.s32 %v73, 512
    %v138 = vadd.s32 %v73, 520
    %v139 = vadd.s32 %v73, 528
    %v140 = vadd.s32 %v73, 536
    %v141 = vadd.s32 %v73, 544
    %v142 = vadd.s32 %v73, 552
    %v143 = vadd.s32 %v73, 560
    %v144 = vadd.s32 %v73, 568
    %v145 = vadd.s32 %v73, 576
    %v146 = vadd.s32 %v73, 584
    %v147 = vadd.s32 %v73, 592
    %v148 = vadd.s32 %v73, 600
    %v149 = vadd.s32 %v73, 608
    %v150 = vadd.s32 %v73, 616
    %v151 = vadd.s32 %v73, 624
    %v152 = vadd.s32 %v73, 632
    %v153 = vadd.s32 %v73, 640
    %v154 = vadd.s32 %v73, 648
    %v155 = vadd.s32 %v73, 656
    %v156 = vadd.s32 %v73, 664
    %v157 = vadd.s32 %v73, 672
    %v158 = vadd.s32 %v73, 680
    %v159 = vadd.s32 %v73, 688
    %v160 = vadd.s32 %v73, 696
    %v161 = vadd.s32 %v73, 704
    %v162 = vadd.s32 %v73, 712
    %v163 = vadd.s32 %v73, 720
    %v164 = vadd.s32 %v73, 728
    %v165 = vadd.s32 %v73, 736
    %v166 = vadd.s32 %v73, 744
    %v167 = vadd.s32 %v73, 752
    %v168 = vadd.s32 %v73, 760
    %v169 = vadd.s32 %v73, 768
    %v170 = vadd.s32 %v73, 776
    %v171 = vadd.s32 %v73, 784
    %v172 = vadd.s32 %v73, 792
    %v173 = vadd.s32 %v73, 800
    %v174 = vadd.s32 %v73, 808
    %v175 = vadd.s32 %v73, 816
    %v176 = vadd.s32 %v73, 824
    %v177 = vadd.s32 %v73, 832
    %v178 = vadd.s32 %v73, 840
    %v179 = vadd.s32 %v73, 848
    %v180 = vadd.s32 %v73, 856
    %v181 = vadd.s32 %v73, 864
    %v182 = vadd.s32 %v73, 872
    %v183 = vadd.s32 %v73, 880
    %v184 = vadd.s32 %v73, 888
    %v185 = vadd.s32 %v73, 896
    %v186 = vadd.s32 %v73, 904
    %v187 = vadd.s32 %v73, 912
    %v188 = vadd.s32 %v73, 920
    %v189 = vadd.s32 %v73, 928
    %v190 = vadd.s32 %v73, 936
    %v191 = vadd.s32 %v73, 944
    %v192 = vadd.s32 %v73, 952
    %v193 = vadd.s32 %v73, 960
    %v194 = vadd.s32 %v73, 968
    %v195 = vadd.s32 %v73, 976
    %v196 = vadd.s32 %v73, 984
    %v197 = vadd.s32 %v73, 992
    %v198 = vadd.s32 %v73, 1000
    %v199 = vadd.s32 %v73, 1008
    %v200 = vadd.s32 %v73, 1016
    %s201 = ssub.s32 1000, %s71
    %v202 = vstv %s201
    %vm203 = vcmp.lt.s32.totalorder %v73, %v202
    %vm204 = vcmp.lt.s32.totalorder %v74, %v202
    %vm205 = vcmp.lt.s32.totalorder %v75, %v202
    %vm206 = vcmp.lt.s32.totalorder %v76, %v202
    %vm207 = vcmp.lt.s32.totalorder %v77, %v202
    %vm208 = vcmp.lt.s32.totalorder %v78, %v202
    %vm209 = vcmp.lt.s32.totalorder %v79, %v202
    %vm210 = vcmp.lt.s32.totalorder %v80, %v202
    %vm211 = vcmp.lt.s32.totalorder %v81, %v202
    %vm212 = vcmp.lt.s32.totalorder %v82, %v202
    %vm213 = vcmp.lt.s32.totalorder %v83, %v202
    %vm214 = vcmp.lt.s32.totalorder %v84, %v202
    %vm215 = vcmp.lt.s32.totalorder %v85, %v202
    %vm216 = vcmp.lt.s32.totalorder %v86, %v202
    %vm217 = vcmp.lt.s32.totalorder %v87, %v202
    %vm218 = vcmp.lt.s32.totalorder %v88, %v202
    %vm219 = vcmp.lt.s32.totalorder %v89, %v202
    %vm220 = vcmp.lt.s32.totalorder %v90, %v202
    %vm221 = vcmp.lt.s32.totalorder %v91, %v202
    %vm222 = vcmp.lt.s32.totalorder %v92, %v202
    %vm223 = vcmp.lt.s32.totalorder %v93, %v202
    %vm224 = vcmp.lt.s32.totalorder %v94, %v202
    %vm225 = vcmp.lt.s32.totalorder %v95, %v202
    %vm226 = vcmp.lt.s32.totalorder %v96, %v202
    %vm227 = vcmp.lt.s32.totalorder %v97, %v202
    %vm228 = vcmp.lt.s32.totalorder %v98, %v202
    %vm229 = vcmp.lt.s32.totalorder %v99, %v202
    %vm230 = vcmp.lt.s32.totalorder %v100, %v202
    %vm231 = vcmp.lt.s32.totalorder %v101, %v202
    %vm232 = vcmp.lt.s32.totalorder %v102, %v202
    %vm233 = vcmp.lt.s32.totalorder %v103, %v202
    %vm234 = vcmp.lt.s32.totalorder %v104, %v202
    %vm235 = vcmp.lt.s32.totalorder %v105, %v202
    %vm236 = vcmp.lt.s32.totalorder %v106, %v202
    %vm237 = vcmp.lt.s32.totalorder %v107, %v202
    %vm238 = vcmp.lt.s32.totalorder %v108, %v202
    %vm239 = vcmp.lt.s32.totalorder %v109, %v202
    %vm240 = vcmp.lt.s32.totalorder %v110, %v202
    %vm241 = vcmp.lt.s32.totalorder %v111, %v202
    %vm242 = vcmp.lt.s32.totalorder %v112, %v202
    %vm243 = vcmp.lt.s32.totalorder %v113, %v202
    %vm244 = vcmp.lt.s32.totalorder %v114, %v202
    %vm245 = vcmp.lt.s32.totalorder %v115, %v202
    %vm246 = vcmp.lt.s32.totalorder %v116, %v202
    %vm247 = vcmp.lt.s32.totalorder %v117, %v202
    %vm248 = vcmp.lt.s32.totalorder %v118, %v202
    %vm249 = vcmp.lt.s32.totalorder %v119, %v202
    %vm250 = vcmp.lt.s32.totalorder %v120, %v202
    %vm251 = vcmp.lt.s32.totalorder %v121, %v202
    %vm252 = vcmp.lt.s32.totalorder %v122, %v202
    %vm253 = vcmp.lt.s32.totalorder %v123, %v202
    %vm254 = vcmp.lt.s32.totalorder %v124, %v202
    %vm255 = vcmp.lt.s32.totalorder %v125, %v202
    %vm256 = vcmp.lt.s32.totalorder %v126, %v202
    %vm257 = vcmp.lt.s32.totalorder %v127, %v202
    %vm258 = vcmp.lt.s32.totalorder %v128, %v202
    %vm259 = vcmp.lt.s32.totalorder %v129, %v202
    %vm260 = vcmp.lt.s32.totalorder %v130, %v202
    %vm261 = vcmp.lt.s32.totalorder %v131, %v202
    %vm262 = vcmp.lt.s32.totalorder %v132, %v202
    %vm263 = vcmp.lt.s32.totalorder %v133, %v202
    %vm264 = vcmp.lt.s32.totalorder %v134, %v202
    %vm265 = vcmp.lt.s32.totalorder %v135, %v202
    %vm266 = vcmp.lt.s32.totalorder %v136, %v202
    %vm267 = vcmp.lt.s32.totalorder %v137, %v202
    %vm268 = vcmp.lt.s32.totalorder %v138, %v202
    %vm269 = vcmp.lt.s32.totalorder %v139, %v202
    %vm270 = vcmp.lt.s32.totalorder %v140, %v202
    %vm271 = vcmp.lt.s32.totalorder %v141, %v202
    %vm272 = vcmp.lt.s32.totalorder %v142, %v202
    %vm273 = vcmp.lt.s32.totalorder %v143, %v202
    %vm274 = vcmp.lt.s32.totalorder %v144, %v202
    %vm275 = vcmp.lt.s32.totalorder %v145, %v202
    %vm276 = vcmp.lt.s32.totalorder %v146, %v202
    %vm277 = vcmp.lt.s32.totalorder %v147, %v202
    %vm278 = vcmp.lt.s32.totalorder %v148, %v202
    %vm279 = vcmp.lt.s32.totalorder %v149, %v202
    %vm280 = vcmp.lt.s32.totalorder %v150, %v202
    %vm281 = vcmp.lt.s32.totalorder %v151, %v202
    %vm282 = vcmp.lt.s32.totalorder %v152, %v202
    %vm283 = vcmp.lt.s32.totalorder %v153, %v202
    %vm284 = vcmp.lt.s32.totalorder %v154, %v202
    %vm285 = vcmp.lt.s32.totalorder %v155, %v202
    %vm286 = vcmp.lt.s32.totalorder %v156, %v202
    %vm287 = vcmp.lt.s32.totalorder %v157, %v202
    %vm288 = vcmp.lt.s32.totalorder %v158, %v202
    %vm289 = vcmp.lt.s32.totalorder %v159, %v202
    %vm290 = vcmp.lt.s32.totalorder %v160, %v202
    %vm291 = vcmp.lt.s32.totalorder %v161, %v202
    %vm292 = vcmp.lt.s32.totalorder %v162, %v202
    %vm293 = vcmp.lt.s32.totalorder %v163, %v202
    %vm294 = vcmp.lt.s32.totalorder %v164, %v202
    %vm295 = vcmp.lt.s32.totalorder %v165, %v202
    %vm296 = vcmp.lt.s32.totalorder %v166, %v202
    %vm297 = vcmp.lt.s32.totalorder %v167, %v202
    %vm298 = vcmp.lt.s32.totalorder %v168, %v202
    %vm299 = vcmp.lt.s32.totalorder %v169, %v202
    %vm300 = vcmp.lt.s32.totalorder %v170, %v202
    %vm301 = vcmp.lt.s32.totalorder %v171, %v202
    %vm302 = vcmp.lt.s32.totalorder %v172, %v202
    %vm303 = vcmp.lt.s32.totalorder %v173, %v202
    %vm304 = vcmp.lt.s32.totalorder %v174, %v202
    %vm305 = vcmp.lt.s32.totalorder %v175, %v202
    %vm306 = vcmp.lt.s32.totalorder %v176, %v202
    %vm307 = vcmp.lt.s32.totalorder %v177, %v202
    %vm308 = vcmp.lt.s32.totalorder %v178, %v202
    %vm309 = vcmp.lt.s32.totalorder %v179, %v202
    %vm310 = vcmp.lt.s32.totalorder %v180, %v202
    %vm311 = vcmp.lt.s32.totalorder %v181, %v202
    %vm312 = vcmp.lt.s32.totalorder %v182, %v202
    %vm313 = vcmp.lt.s32.totalorder %v183, %v202
    %vm314 = vcmp.lt.s32.totalorder %v184, %v202
    %vm315 = vcmp.lt.s32.totalorder %v185, %v202
    %vm316 = vcmp.lt.s32.totalorder %v186, %v202
    %vm317 = vcmp.lt.s32.totalorder %v187, %v202
    %vm318 = vcmp.lt.s32.totalorder %v188, %v202
    %vm319 = vcmp.lt.s32.totalorder %v189, %v202
    %vm320 = vcmp.lt.s32.totalorder %v190, %v202
    %vm321 = vcmp.lt.s32.totalorder %v191, %v202
    %vm322 = vcmp.lt.s32.totalorder %v192, %v202
    %vm323 = vcmp.lt.s32.totalorder %v193, %v202
    %vm324 = vcmp.lt.s32.totalorder %v194, %v202
    %vm325 = vcmp.lt.s32.totalorder %v195, %v202
    %vm326 = vcmp.lt.s32.totalorder %v196, %v202
    %vm327 = vcmp.lt.s32.totalorder %v197, %v202
    %vm328 = vcmp.lt.s32.totalorder %v198, %v202
    %vm329 = vcmp.lt.s32.totalorder %v199, %v202
    %vm330 = vcmp.lt.s32.totalorder %v200, %v202
    %v331 = vld [vmem:[%s51] sm:$0xff]
    %v332 = vld [vmem:[%s51 + $0x8] sm:$0xff]
    %v333 = vld [vmem:[%s51 + $0x10] sm:$0xff]
    %v334 = vld [vmem:[%s51 + $0x18] sm:$0xff]
    %v335 = vld [vmem:[%s51 + $0x20] sm:$0xff]
    %v336 = vld [vmem:[%s51 + $0x28] sm:$0xff]
    %v337 = vld [vmem:[%s51 + $0x30] sm:$0xff]
    %v338 = vld [vmem:[%s51 + $0x38] sm:$0xff]
    %v339 = vld [vmem:[%s51 + $0x40] sm:$0xff]
    %v340 = vld [vmem:[%s51 + $0x48] sm:$0xff]
    %v341 = vld [vmem:[%s51 + $0x50] sm:$0xff]
    %v342 = vld [vmem:[%s51 + $0x58] sm:$0xff]
    %v343 = vld [vmem:[%s51 + $0x60] sm:$0xff]
    %v344 = vld [vmem:[%s51 + $0x68] sm:$0xff]
    %v345 = vld [vmem:[%s51 + $0x70] sm:$0xff]
    %v346 = vld [vmem:[%s51 + $0x78] sm:$0xff]
    %v347 = vld [vmem:[%s51 + $0x80] sm:$0xff]
    %v348 = vld [vmem:[%s51 + $0x88] sm:$0xff]
    %v349 = vld [vmem:[%s51 + $0x90] sm:$0xff]
    %v350 = vld [vmem:[%s51 + $0x98] sm:$0xff]
    %v351 = vld [vmem:[%s51 + $0xa0] sm:$0xff]
    %v352 = vld [vmem:[%s51 + $0xa8] sm:$0xff]
    %v353 = vld [vmem:[%s51 + $0xb0] sm:$0xff]
    %v354 = vld [vmem:[%s51 + $0xb8] sm:$0xff]
    %v355 = vld [vmem:[%s51 + $0xc0] sm:$0xff]
    %v356 = vld [vmem:[%s51 + $0xc8] sm:$0xff]
    %v357 = vld [vmem:[%s51 + $0xd0] sm:$0xff]
    %v358 = vld [vmem:[%s51 + $0xd8] sm:$0xff]
    %v359 = vld [vmem:[%s51 + $0xe0] sm:$0xff]
    %v360 = vld [vmem:[%s51 + $0xe8] sm:$0xff]
    %v361 = vld [vmem:[%s51 + $0xf0] sm:$0xff]
    %v362 = vld [vmem:[%s51 + $0xf8] sm:$0xff]
    %v363 = vld [vmem:[%s51 + $0x100] sm:$0xff]
    %v364 = vld [vmem:[%s51 + $0x108] sm:$0xff]
    %v365 = vld [vmem:[%s51 + $0x110] sm:$0xff]
    %v366 = vld [vmem:[%s51 + $0x118] sm:$0xff]
    %v367 = vld [vmem:[%s51 + $0x120] sm:$0xff]
    %v368 = vld [vmem:[%s51 + $0x128] sm:$0xff]
    %v369 = vld [vmem:[%s51 + $0x130] sm:$0xff]
    %v370 = vld [vmem:[%s51 + $0x138] sm:$0xff]
    %v371 = vld [vmem:[%s51 + $0x140] sm:$0xff]
    %v372 = vld [vmem:[%s51 + $0x148] sm:$0xff]
    %v373 = vld [vmem:[%s51 + $0x150] sm:$0xff]
    %v374 = vld [vmem:[%s51 + $0x158] sm:$0xff]
    %v375 = vld [vmem:[%s51 + $0x160] sm:$0xff]
    %v376 = vld [vmem:[%s51 + $0x168] sm:$0xff]
    %v377 = vld [vmem:[%s51 + $0x170] sm:$0xff]
    %v378 = vld [vmem:[%s51 + $0x178] sm:$0xff]
    %v379 = vld [vmem:[%s51 + $0x180] sm:$0xff]
    %v380 = vld [vmem:[%s51 + $0x188] sm:$0xff]
    %v381 = vld [vmem:[%s51 + $0x190] sm:$0xff]
    %v382 = vld [vmem:[%s51 + $0x198] sm:$0xff]
    %v383 = vld [vmem:[%s51 + $0x1a0] sm:$0xff]
    %v384 = vld [vmem:[%s51 + $0x1a8] sm:$0xff]
    %v385 = vld [vmem:[%s51 + $0x1b0] sm:$0xff]
    %v386 = vld [vmem:[%s51 + $0x1b8] sm:$0xff]
    %v387 = vld [vmem:[%s51 + $0x1c0] sm:$0xff]
    %v388 = vld [vmem:[%s51 + $0x1c8] sm:$0xff]
    %v389 = vld [vmem:[%s51 + $0x1d0] sm:$0xff]
    %v390 = vld [vmem:[%s51 + $0x1d8] sm:$0xff]
    %v391 = vld [vmem:[%s51 + $0x1e0] sm:$0xff]
    %v392 = vld [vmem:[%s51 + $0x1e8] sm:$0xff]
    %v393 = vld [vmem:[%s51 + $0x1f0] sm:$0xff]
    %v394 = vld [vmem:[%s51 + $0x1f8] sm:$0xff]
    %v395 = vld [vmem:[%s51 + $0x200] sm:$0xff]
    %v396 = vld [vmem:[%s51 + $0x208] sm:$0xff]
    %v397 = vld [vmem:[%s51 + $0x210] sm:$0xff]
    %v398 = vld [vmem:[%s51 + $0x218] sm:$0xff]
    %v399 = vld [vmem:[%s51 + $0x220] sm:$0xff]
    %v400 = vld [vmem:[%s51 + $0x228] sm:$0xff]
    %v401 = vld [vmem:[%s51 + $0x230] sm:$0xff]
    %v402 = vld [vmem:[%s51 + $0x238] sm:$0xff]
    %v403 = vld [vmem:[%s51 + $0x240] sm:$0xff]
    %v404 = vld [vmem:[%s51 + $0x248] sm:$0xff]
    %v405 = vld [vmem:[%s51 + $0x250] sm:$0xff]
    %v406 = vld [vmem:[%s51 + $0x258] sm:$0xff]
    %v407 = vld [vmem:[%s51 + $0x260] sm:$0xff]
    %v408 = vld [vmem:[%s51 + $0x268] sm:$0xff]
    %v409 = vld [vmem:[%s51 + $0x270] sm:$0xff]
    %v410 = vld [vmem:[%s51 + $0x278] sm:$0xff]
    %v411 = vld [vmem:[%s51 + $0x280] sm:$0xff]
    %v412 = vld [vmem:[%s51 + $0x288] sm:$0xff]
    %v413 = vld [vmem:[%s51 + $0x290] sm:$0xff]
    %v414 = vld [vmem:[%s51 + $0x298] sm:$0xff]
    %v415 = vld [vmem:[%s51 + $0x2a0] sm:$0xff]
    %v416 = vld [vmem:[%s51 + $0x2a8] sm:$0xff]
    %v417 = vld [vmem:[%s51 + $0x2b0] sm:$0xff]
    %v418 = vld [vmem:[%s51 + $0x2b8] sm:$0xff]
    %v419 = vld [vmem:[%s51 + $0x2c0] sm:$0xff]
    %v420 = vld [vmem:[%s51 + $0x2c8] sm:$0xff]
    %v421 = vld [vmem:[%s51 + $0x2d0] sm:$0xff]
    %v422 = vld [vmem:[%s51 + $0x2d8] sm:$0xff]
    %v423 = vld [vmem:[%s51 + $0x2e0] sm:$0xff]
    %v424 = vld [vmem:[%s51 + $0x2e8] sm:$0xff]
    %v425 = vld [vmem:[%s51 + $0x2f0] sm:$0xff]
    %v426 = vld [vmem:[%s51 + $0x2f8] sm:$0xff]
    %v427 = vld [vmem:[%s51 + $0x300] sm:$0xff]
    %v428 = vld [vmem:[%s51 + $0x308] sm:$0xff]
    %v429 = vld [vmem:[%s51 + $0x310] sm:$0xff]
    %v430 = vld [vmem:[%s51 + $0x318] sm:$0xff]
    %v431 = vld [vmem:[%s51 + $0x320] sm:$0xff]
    %v432 = vld [vmem:[%s51 + $0x328] sm:$0xff]
    %v433 = vld [vmem:[%s51 + $0x330] sm:$0xff]
    %v434 = vld [vmem:[%s51 + $0x338] sm:$0xff]
    %v435 = vld [vmem:[%s51 + $0x340] sm:$0xff]
    %v436 = vld [vmem:[%s51 + $0x348] sm:$0xff]
    %v437 = vld [vmem:[%s51 + $0x350] sm:$0xff]
    %v438 = vld [vmem:[%s51 + $0x358] sm:$0xff]
    %v439 = vld [vmem:[%s51 + $0x360] sm:$0xff]
    %v440 = vld [vmem:[%s51 + $0x368] sm:$0xff]
    %v441 = vld [vmem:[%s51 + $0x370] sm:$0xff]
    %v442 = vld [vmem:[%s51 + $0x378] sm:$0xff]
    %v443 = vld [vmem:[%s51 + $0x380] sm:$0xff]
    %v444 = vld [vmem:[%s51 + $0x388] sm:$0xff]
    %v445 = vld [vmem:[%s51 + $0x390] sm:$0xff]
    %v446 = vld [vmem:[%s51 + $0x398] sm:$0xff]
    %v447 = vld [vmem:[%s51 + $0x3a0] sm:$0xff]
    %v448 = vld [vmem:[%s51 + $0x3a8] sm:$0xff]
    %v449 = vld [vmem:[%s51 + $0x3b0] sm:$0xff]
    %v450 = vld [vmem:[%s51 + $0x3b8] sm:$0xff]
    %v451 = vld [vmem:[%s51 + $0x3c0] sm:$0xff]
    %v452 = vld [vmem:[%s51 + $0x3c8] sm:$0xff]
    %v453 = vld [vmem:[%s51 + $0x3d0] sm:$0xff]
    %v454 = vld [vmem:[%s51 + $0x3d8] sm:$0xff]
    %v455 = vld [vmem:[%s51 + $0x3e0] sm:$0xff]
    %v456 = vld [vmem:[%s51 + $0x3e8] sm:$0xff]
    %v457 = vld [vmem:[%s51 + $0x3f0] sm:$0xff]
    %v458 = vld [vmem:[%s51 + $0x3f8] sm:$0xff]
    %v459 = vsel %vm203, 1, 0
    %v460 = vsel %vm204, 1, 0
    %v461 = vsel %vm205, 1, 0
    %v462 = vsel %vm206, 1, 0
    %v463 = vsel %vm207, 1, 0
    %v464 = vsel %vm208, 1, 0
    %v465 = vsel %vm209, 1, 0
    %v466 = vsel %vm210, 1, 0
    %v467 = vsel %vm211, 1, 0
    %v468 = vsel %vm212, 1, 0
    %v469 = vsel %vm213, 1, 0
    %v470 = vsel %vm214, 1, 0
    %v471 = vsel %vm215, 1, 0
    %v472 = vsel %vm216, 1, 0
    %v473 = vsel %vm217, 1, 0
    %v474 = vsel %vm218, 1, 0
    %v475 = vsel %vm219, 1, 0
    %v476 = vsel %vm220, 1, 0
    %v477 = vsel %vm221, 1, 0
    %v478 = vsel %vm222, 1, 0
    %v479 = vsel %vm223, 1, 0
    %v480 = vsel %vm224, 1, 0
    %v481 = vsel %vm225, 1, 0
    %v482 = vsel %vm226, 1, 0
    %v483 = vsel %vm227, 1, 0
    %v484 = vsel %vm228, 1, 0
    %v485 = vsel %vm229, 1, 0
    %v486 = vsel %vm230, 1, 0
    %v487 = vsel %vm231, 1, 0
    %v488 = vsel %vm232, 1, 0
    %v489 = vsel %vm233, 1, 0
    %v490 = vsel %vm234, 1, 0
    %v491 = vsel %vm235, 1, 0
    %v492 = vsel %vm236, 1, 0
    %v493 = vsel %vm237, 1, 0
    %v494 = vsel %vm238, 1, 0
    %v495 = vsel %vm239, 1, 0
    %v496 = vsel %vm240, 1, 0
    %v497 = vsel %vm241, 1, 0
    %v498 = vsel %vm242, 1, 0
    %v499 = vsel %vm243, 1, 0
    %v500 = vsel %vm244, 1, 0
    %v501 = vsel %vm245, 1, 0
    %v502 = vsel %vm246, 1, 0
    %v503 = vsel %vm247, 1, 0
    %v504 = vsel %vm248, 1, 0
    %v505 = vsel %vm249, 1, 0
    %v506 = vsel %vm250, 1, 0
    %v507 = vsel %vm251, 1, 0
    %v508 = vsel %vm252, 1, 0
    %v509 = vsel %vm253, 1, 0
    %v510 = vsel %vm254, 1, 0
    %v511 = vsel %vm255, 1, 0
    %v512 = vsel %vm256, 1, 0
    %v513 = vsel %vm257, 1, 0
    %v514 = vsel %vm258, 1, 0
    %v515 = vsel %vm259, 1, 0
    %v516 = vsel %vm260, 1, 0
    %v517 = vsel %vm261, 1, 0
    %v518 = vsel %vm262, 1, 0
    %v519 = vsel %vm263, 1, 0
    %v520 = vsel %vm264, 1, 0
    %v521 = vsel %vm265, 1, 0
    %v522 = vsel %vm266, 1, 0
    %v523 = vsel %vm267, 1, 0
    %v524 = vsel %vm268, 1, 0
    %v525 = vsel %vm269, 1, 0
    %v526 = vsel %vm270, 1, 0
    %v527 = vsel %vm271, 1, 0
    %v528 = vsel %vm272, 1, 0
    %v529 = vsel %vm273, 1, 0
    %v530 = vsel %vm274, 1, 0
    %v531 = vsel %vm275, 1, 0
    %v532 = vsel %vm276, 1, 0
    %v533 = vsel %vm277, 1, 0
    %v534 = vsel %vm278, 1, 0
    %v535 = vsel %vm279, 1, 0
    %v536 = vsel %vm280, 1, 0
    %v537 = vsel %vm281, 1, 0
    %v538 = vsel %vm282, 1, 0
    %v539 = vsel %vm283, 1, 0
    %v540 = vsel %vm284, 1, 0
    %v541 = vsel %vm285, 1, 0
    %v542 = vsel %vm286, 1, 0
    %v543 = vsel %vm287, 1, 0
    %v544 = vsel %vm288, 1, 0
    %v545 = vsel %vm289, 1, 0
    %v546 = vsel %vm290, 1, 0
    %v547 = vsel %vm291, 1, 0
    %v548 = vsel %vm292, 1, 0
    %v549 = vsel %vm293, 1, 0
    %v550 = vsel %vm294, 1, 0
    %v551 = vsel %vm295, 1, 0
    %v552 = vsel %vm296, 1, 0
    %v553 = vsel %vm297, 1, 0
    %v554 = vsel %vm298, 1, 0
    %v555 = vsel %vm299, 1, 0
    %v556 = vsel %vm300, 1, 0
    %v557 = vsel %vm301, 1, 0
    %v558 = vsel %vm302, 1, 0
    %v559 = vsel %vm303, 1, 0
    %v560 = vsel %vm304, 1, 0
    %v561 = vsel %vm305, 1, 0
    %v562 = vsel %vm306, 1, 0
    %v563 = vsel %vm307, 1, 0
    %v564 = vsel %vm308, 1, 0
    %v565 = vsel %vm309, 1, 0
    %v566 = vsel %vm310, 1, 0
    %v567 = vsel %vm311, 1, 0
    %v568 = vsel %vm312, 1, 0
    %v569 = vsel %vm313, 1, 0
    %v570 = vsel %vm314, 1, 0
    %v571 = vsel %vm315, 1, 0
    %v572 = vsel %vm316, 1, 0
    %v573 = vsel %vm317, 1, 0
    %v574 = vsel %vm318, 1, 0
    %v575 = vsel %vm319, 1, 0
    %v576 = vsel %vm320, 1, 0
    %v577 = vsel %vm321, 1, 0
    %v578 = vsel %vm322, 1, 0
    %v579 = vsel %vm323, 1, 0
    %v580 = vsel %vm324, 1, 0
    %v581 = vsel %vm325, 1, 0
    %v582 = vsel %vm326, 1, 0
    %v583 = vsel %vm327, 1, 0
    %v584 = vsel %vm328, 1, 0
    %v585 = vsel %vm329, 1, 0
    %v586 = vsel %vm330, 1, 0
    %vm587 = vcmp.eq.s32.totalorder %v459, 1
    %vm588 = vcmp.eq.s32.totalorder %v460, 1
    %vm589 = vcmp.eq.s32.totalorder %v461, 1
    %vm590 = vcmp.eq.s32.totalorder %v462, 1
    %vm591 = vcmp.eq.s32.totalorder %v463, 1
    %vm592 = vcmp.eq.s32.totalorder %v464, 1
    %vm593 = vcmp.eq.s32.totalorder %v465, 1
    %vm594 = vcmp.eq.s32.totalorder %v466, 1
    %vm595 = vcmp.eq.s32.totalorder %v467, 1
    %vm596 = vcmp.eq.s32.totalorder %v468, 1
    %vm597 = vcmp.eq.s32.totalorder %v469, 1
    %vm598 = vcmp.eq.s32.totalorder %v470, 1
    %vm599 = vcmp.eq.s32.totalorder %v471, 1
    %vm600 = vcmp.eq.s32.totalorder %v472, 1
    %vm601 = vcmp.eq.s32.totalorder %v473, 1
    %vm602 = vcmp.eq.s32.totalorder %v474, 1
    %vm603 = vcmp.eq.s32.totalorder %v475, 1
    %vm604 = vcmp.eq.s32.totalorder %v476, 1
    %vm605 = vcmp.eq.s32.totalorder %v477, 1
    %vm606 = vcmp.eq.s32.totalorder %v478, 1
    %vm607 = vcmp.eq.s32.totalorder %v479, 1
    %vm608 = vcmp.eq.s32.totalorder %v480, 1
    %vm609 = vcmp.eq.s32.totalorder %v481, 1
    %vm610 = vcmp.eq.s32.totalorder %v482, 1
    %vm611 = vcmp.eq.s32.totalorder %v483, 1
    %vm612 = vcmp.eq.s32.totalorder %v484, 1
    %vm613 = vcmp.eq.s32.totalorder %v485, 1
    %vm614 = vcmp.eq.s32.totalorder %v486, 1
    %vm615 = vcmp.eq.s32.totalorder %v487, 1
    %vm616 = vcmp.eq.s32.totalorder %v488, 1
    %vm617 = vcmp.eq.s32.totalorder %v489, 1
    %vm618 = vcmp.eq.s32.totalorder %v490, 1
    %vm619 = vcmp.eq.s32.totalorder %v491, 1
    %vm620 = vcmp.eq.s32.totalorder %v492, 1
    %vm621 = vcmp.eq.s32.totalorder %v493, 1
    %vm622 = vcmp.eq.s32.totalorder %v494, 1
    %vm623 = vcmp.eq.s32.totalorder %v495, 1
    %vm624 = vcmp.eq.s32.totalorder %v496, 1
    %vm625 = vcmp.eq.s32.totalorder %v497, 1
    %vm626 = vcmp.eq.s32.totalorder %v498, 1
    %vm627 = vcmp.eq.s32.totalorder %v499, 1
    %vm628 = vcmp.eq.s32.totalorder %v500, 1
    %vm629 = vcmp.eq.s32.totalorder %v501, 1
    %vm630 = vcmp.eq.s32.totalorder %v502, 1
    %vm631 = vcmp.eq.s32.totalorder %v503, 1
    %vm632 = vcmp.eq.s32.totalorder %v504, 1
    %vm633 = vcmp.eq.s32.totalorder %v505, 1
    %vm634 = vcmp.eq.s32.totalorder %v506, 1
    %vm635 = vcmp.eq.s32.totalorder %v507, 1
    %vm636 = vcmp.eq.s32.totalorder %v508, 1
    %vm637 = vcmp.eq.s32.totalorder %v509, 1
    %vm638 = vcmp.eq.s32.totalorder %v510, 1
    %vm639 = vcmp.eq.s32.totalorder %v511, 1
    %vm640 = vcmp.eq.s32.totalorder %v512, 1
    %vm641 = vcmp.eq.s32.totalorder %v513, 1
    %vm642 = vcmp.eq.s32.totalorder %v514, 1
    %vm643 = vcmp.eq.s32.totalorder %v515, 1
    %vm644 = vcmp.eq.s32.totalorder %v516, 1
    %vm645 = vcmp.eq.s32.totalorder %v517, 1
    %vm646 = vcmp.eq.s32.totalorder %v518, 1
    %vm647 = vcmp.eq.s32.totalorder %v519, 1
    %vm648 = vcmp.eq.s32.totalorder %v520, 1
    %vm649 = vcmp.eq.s32.totalorder %v521, 1
    %vm650 = vcmp.eq.s32.totalorder %v522, 1
    %vm651 = vcmp.eq.s32.totalorder %v523, 1
    %vm652 = vcmp.eq.s32.totalorder %v524, 1
    %vm653 = vcmp.eq.s32.totalorder %v525, 1
    %vm654 = vcmp.eq.s32.totalorder %v526, 1
    %vm655 = vcmp.eq.s32.totalorder %v527, 1
    %vm656 = vcmp.eq.s32.totalorder %v528, 1
    %vm657 = vcmp.eq.s32.totalorder %v529, 1
    %vm658 = vcmp.eq.s32.totalorder %v530, 1
    %vm659 = vcmp.eq.s32.totalorder %v531, 1
    %vm660 = vcmp.eq.s32.totalorder %v532, 1
    %vm661 = vcmp.eq.s32.totalorder %v533, 1
    %vm662 = vcmp.eq.s32.totalorder %v534, 1
    %vm663 = vcmp.eq.s32.totalorder %v535, 1
    %vm664 = vcmp.eq.s32.totalorder %v536, 1
    %vm665 = vcmp.eq.s32.totalorder %v537, 1
    %vm666 = vcmp.eq.s32.totalorder %v538, 1
    %vm667 = vcmp.eq.s32.totalorder %v539, 1
    %vm668 = vcmp.eq.s32.totalorder %v540, 1
    %vm669 = vcmp.eq.s32.totalorder %v541, 1
    %vm670 = vcmp.eq.s32.totalorder %v542, 1
    %vm671 = vcmp.eq.s32.totalorder %v543, 1
    %vm672 = vcmp.eq.s32.totalorder %v544, 1
    %vm673 = vcmp.eq.s32.totalorder %v545, 1
    %vm674 = vcmp.eq.s32.totalorder %v546, 1
    %vm675 = vcmp.eq.s32.totalorder %v547, 1
    %vm676 = vcmp.eq.s32.totalorder %v548, 1
    %vm677 = vcmp.eq.s32.totalorder %v549, 1
    %vm678 = vcmp.eq.s32.totalorder %v550, 1
    %vm679 = vcmp.eq.s32.totalorder %v551, 1
    %vm680 = vcmp.eq.s32.totalorder %v552, 1
    %vm681 = vcmp.eq.s32.totalorder %v553, 1
    %vm682 = vcmp.eq.s32.totalorder %v554, 1
    %vm683 = vcmp.eq.s32.totalorder %v555, 1
    %vm684 = vcmp.eq.s32.totalorder %v556, 1
    %vm685 = vcmp.eq.s32.totalorder %v557, 1
    %vm686 = vcmp.eq.s32.totalorder %v558, 1
    %vm687 = vcmp.eq.s32.totalorder %v559, 1
    %vm688 = vcmp.eq.s32.totalorder %v560, 1
    %vm689 = vcmp.eq.s32.totalorder %v561, 1
    %vm690 = vcmp.eq.s32.totalorder %v562, 1
    %vm691 = vcmp.eq.s32.totalorder %v563, 1
    %vm692 = vcmp.eq.s32.totalorder %v564, 1
    %vm693 = vcmp.eq.s32.totalorder %v565, 1
    %vm694 = vcmp.eq.s32.totalorder %v566, 1
    %vm695 = vcmp.eq.s32.totalorder %v567, 1
    %vm696 = vcmp.eq.s32.totalorder %v568, 1
    %vm697 = vcmp.eq.s32.totalorder %v569, 1
    %vm698 = vcmp.eq.s32.totalorder %v570, 1
    %vm699 = vcmp.eq.s32.totalorder %v571, 1
    %vm700 = vcmp.eq.s32.totalorder %v572, 1
    %vm701 = vcmp.eq.s32.totalorder %v573, 1
    %vm702 = vcmp.eq.s32.totalorder %v574, 1
    %vm703 = vcmp.eq.s32.totalorder %v575, 1
    %vm704 = vcmp.eq.s32.totalorder %v576, 1
    %vm705 = vcmp.eq.s32.totalorder %v577, 1
    %vm706 = vcmp.eq.s32.totalorder %v578, 1
    %vm707 = vcmp.eq.s32.totalorder %v579, 1
    %vm708 = vcmp.eq.s32.totalorder %v580, 1
    %vm709 = vcmp.eq.s32.totalorder %v581, 1
    %vm710 = vcmp.eq.s32.totalorder %v582, 1
    %vm711 = vcmp.eq.s32.totalorder %v583, 1
    %vm712 = vcmp.eq.s32.totalorder %v584, 1
    %vm713 = vcmp.eq.s32.totalorder %v585, 1
    %vm714 = vcmp.eq.s32.totalorder %v586, 1
    %v715 = vsel %vm587, %v331, 0.0
    %v716 = vsel %vm588, %v332, 0.0
    %v717 = vsel %vm589, %v333, 0.0
    %v718 = vsel %vm590, %v334, 0.0
    %v719 = vsel %vm591, %v335, 0.0
    %v720 = vsel %vm592, %v336, 0.0
    %v721 = vsel %vm593, %v337, 0.0
    %v722 = vsel %vm594, %v338, 0.0
    %v723 = vsel %vm595, %v339, 0.0
    %v724 = vsel %vm596, %v340, 0.0
    %v725 = vsel %vm597, %v341, 0.0
    %v726 = vsel %vm598, %v342, 0.0
    %v727 = vsel %vm599, %v343, 0.0
    %v728 = vsel %vm600, %v344, 0.0
    %v729 = vsel %vm601, %v345, 0.0
    %v730 = vsel %vm602, %v346, 0.0
    %v731 = vsel %vm603, %v347, 0.0
    %v732 = vsel %vm604, %v348, 0.0
    %v733 = vsel %vm605, %v349, 0.0
    %v734 = vsel %vm606, %v350, 0.0
    %v735 = vsel %vm607, %v351, 0.0
    %v736 = vsel %vm608, %v352, 0.0
    %v737 = vsel %vm609, %v353, 0.0
    %v738 = vsel %vm610, %v354, 0.0
    %v739 = vsel %vm611, %v355, 0.0
    %v740 = vsel %vm612, %v356, 0.0
    %v741 = vsel %vm613, %v357, 0.0
    %v742 = vsel %vm614, %v358, 0.0
    %v743 = vsel %vm615, %v359, 0.0
    %v744 = vsel %vm616, %v360, 0.0
    %v745 = vsel %vm617, %v361, 0.0
    %v746 = vsel %vm618, %v362, 0.0
    %v747 = vsel %vm619, %v363, 0.0
    %v748 = vsel %vm620, %v364, 0.0
    %v749 = vsel %vm621, %v365, 0.0
    %v750 = vsel %vm622, %v366, 0.0
    %v751 = vsel %vm623, %v367, 0.0
    %v752 = vsel %vm624, %v368, 0.0
    %v753 = vsel %vm625, %v369, 0.0
    %v754 = vsel %vm626, %v370, 0.0
    %v755 = vsel %vm627, %v371, 0.0
    %v756 = vsel %vm628, %v372, 0.0
    %v757 = vsel %vm629, %v373, 0.0
    %v758 = vsel %vm630, %v374, 0.0
    %v759 = vsel %vm631, %v375, 0.0
    %v760 = vsel %vm632, %v376, 0.0
    %v761 = vsel %vm633, %v377, 0.0
    %v762 = vsel %vm634, %v378, 0.0
    %v763 = vsel %vm635, %v379, 0.0
    %v764 = vsel %vm636, %v380, 0.0
    %v765 = vsel %vm637, %v381, 0.0
    %v766 = vsel %vm638, %v382, 0.0
    %v767 = vsel %vm639, %v383, 0.0
    %v768 = vsel %vm640, %v384, 0.0
    %v769 = vsel %vm641, %v385, 0.0
    %v770 = vsel %vm642, %v386, 0.0
    %v771 = vsel %vm643, %v387, 0.0
    %v772 = vsel %vm644, %v388, 0.0
    %v773 = vsel %vm645, %v389, 0.0
    %v774 = vsel %vm646, %v390, 0.0
    %v775 = vsel %vm647, %v391, 0.0
    %v776 = vsel %vm648, %v392, 0.0
    %v777 = vsel %vm649, %v393, 0.0
    %v778 = vsel %vm650, %v394, 0.0
    %v779 = vsel %vm651, %v395, 0.0
    %v780 = vsel %vm652, %v396, 0.0
    %v781 = vsel %vm653, %v397, 0.0
    %v782 = vsel %vm654, %v398, 0.0
    %v783 = vsel %vm655, %v399, 0.0
    %v784 = vsel %vm656, %v400, 0.0
    %v785 = vsel %vm657, %v401, 0.0
    %v786 = vsel %vm658, %v402, 0.0
    %v787 = vsel %vm659, %v403, 0.0
    %v788 = vsel %vm660, %v404, 0.0
    %v789 = vsel %vm661, %v405, 0.0
    %v790 = vsel %vm662, %v406, 0.0
    %v791 = vsel %vm663, %v407, 0.0
    %v792 = vsel %vm664, %v408, 0.0
    %v793 = vsel %vm665, %v409, 0.0
    %v794 = vsel %vm666, %v410, 0.0
    %v795 = vsel %vm667, %v411, 0.0
    %v796 = vsel %vm668, %v412, 0.0
    %v797 = vsel %vm669, %v413, 0.0
    %v798 = vsel %vm670, %v414, 0.0
    %v799 = vsel %vm671, %v415, 0.0
    %v800 = vsel %vm672, %v416, 0.0
    %v801 = vsel %vm673, %v417, 0.0
    %v802 = vsel %vm674, %v418, 0.0
    %v803 = vsel %vm675, %v419, 0.0
    %v804 = vsel %vm676, %v420, 0.0
    %v805 = vsel %vm677, %v421, 0.0
    %v806 = vsel %vm678, %v422, 0.0
    %v807 = vsel %vm679, %v423, 0.0
    %v808 = vsel %vm680, %v424, 0.0
    %v809 = vsel %vm681, %v425, 0.0
    %v810 = vsel %vm682, %v426, 0.0
    %v811 = vsel %vm683, %v427, 0.0
    %v812 = vsel %vm684, %v428, 0.0
    %v813 = vsel %vm685, %v429, 0.0
    %v814 = vsel %vm686, %v430, 0.0
    %v815 = vsel %vm687, %v431, 0.0
    %v816 = vsel %vm688, %v432, 0.0
    %v817 = vsel %vm689, %v433, 0.0
    %v818 = vsel %vm690, %v434, 0.0
    %v819 = vsel %vm691, %v435, 0.0
    %v820 = vsel %vm692, %v436, 0.0
    %v821 = vsel %vm693, %v437, 0.0
    %v822 = vsel %vm694, %v438, 0.0
    %v823 = vsel %vm695, %v439, 0.0
    %v824 = vsel %vm696, %v440, 0.0
    %v825 = vsel %vm697, %v441, 0.0
    %v826 = vsel %vm698, %v442, 0.0
    %v827 = vsel %vm699, %v443, 0.0
    %v828 = vsel %vm700, %v444, 0.0
    %v829 = vsel %vm701, %v445, 0.0
    %v830 = vsel %vm702, %v446, 0.0
    %v831 = vsel %vm703, %v447, 0.0
    %v832 = vsel %vm704, %v448, 0.0
    %v833 = vsel %vm705, %v449, 0.0
    %v834 = vsel %vm706, %v450, 0.0
    %v835 = vsel %vm707, %v451, 0.0
    %v836 = vsel %vm708, %v452, 0.0
    %v837 = vsel %vm709, %v453, 0.0
    %v838 = vsel %vm710, %v454, 0.0
    %v839 = vsel %vm711, %v455, 0.0
    %v840 = vsel %vm712, %v456, 0.0
    %v841 = vsel %vm713, %v457, 0.0
    %v842 = vsel %vm714, %v458, 0.0
    %v843 = vpack.c.bf16 %v716, %v715
    %v844 = vpack.c.bf16 %v718, %v717
    %v845 = vpack.c.bf16 %v720, %v719
    %v846 = vpack.c.bf16 %v722, %v721
    %v847 = vpack.c.bf16 %v724, %v723
    %v848 = vpack.c.bf16 %v726, %v725
    %v849 = vpack.c.bf16 %v728, %v727
    %v850 = vpack.c.bf16 %v730, %v729
    %v851 = vpack.c.bf16 %v732, %v731
    %v852 = vpack.c.bf16 %v734, %v733
    %v853 = vpack.c.bf16 %v736, %v735
    %v854 = vpack.c.bf16 %v738, %v737
    %v855 = vpack.c.bf16 %v740, %v739
    %v856 = vpack.c.bf16 %v742, %v741
    %v857 = vpack.c.bf16 %v744, %v743
    %v858 = vpack.c.bf16 %v746, %v745
    %v859 = vpack.c.bf16 %v748, %v747
    %v860 = vpack.c.bf16 %v750, %v749
    %v861 = vpack.c.bf16 %v752, %v751
    %v862 = vpack.c.bf16 %v754, %v753
    %v863 = vpack.c.bf16 %v756, %v755
    %v864 = vpack.c.bf16 %v758, %v757
    %v865 = vpack.c.bf16 %v760, %v759
    %v866 = vpack.c.bf16 %v762, %v761
    %v867 = vpack.c.bf16 %v764, %v763
    %v868 = vpack.c.bf16 %v766, %v765
    %v869 = vpack.c.bf16 %v768, %v767
    %v870 = vpack.c.bf16 %v770, %v769
    %v871 = vpack.c.bf16 %v772, %v771
    %v872 = vpack.c.bf16 %v774, %v773
    %v873 = vpack.c.bf16 %v776, %v775
    %v874 = vpack.c.bf16 %v778, %v777
    %v875 = vpack.c.bf16 %v780, %v779
    %v876 = vpack.c.bf16 %v782, %v781
    %v877 = vpack.c.bf16 %v784, %v783
    %v878 = vpack.c.bf16 %v786, %v785
    %v879 = vpack.c.bf16 %v788, %v787
    %v880 = vpack.c.bf16 %v790, %v789
    %v881 = vpack.c.bf16 %v792, %v791
    %v882 = vpack.c.bf16 %v794, %v793
    %v883 = vpack.c.bf16 %v796, %v795
    %v884 = vpack.c.bf16 %v798, %v797
    %v885 = vpack.c.bf16 %v800, %v799
    %v886 = vpack.c.bf16 %v802, %v801
    %v887 = vpack.c.bf16 %v804, %v803
    %v888 = vpack.c.bf16 %v806, %v805
    %v889 = vpack.c.bf16 %v808, %v807
    %v890 = vpack.c.bf16 %v810, %v809
    %v891 = vpack.c.bf16 %v812, %v811
    %v892 = vpack.c.bf16 %v814, %v813
    %v893 = vpack.c.bf16 %v816, %v815
    %v894 = vpack.c.bf16 %v818, %v817
    %v895 = vpack.c.bf16 %v820, %v819
    %v896 = vpack.c.bf16 %v822, %v821
    %v897 = vpack.c.bf16 %v824, %v823
    %v898 = vpack.c.bf16 %v826, %v825
    %v899 = vpack.c.bf16 %v828, %v827
    %v900 = vpack.c.bf16 %v830, %v829
    %v901 = vpack.c.bf16 %v832, %v831
    %v902 = vpack.c.bf16 %v834, %v833
    %v903 = vpack.c.bf16 %v836, %v835
    %v904 = vpack.c.bf16 %v838, %v837
    %v905 = vpack.c.bf16 %v840, %v839
    %v906 = vpack.c.bf16 %v842, %v841
    %v907 = vld [vmem:[%s60] sm:$0xff]
    %v908 = vlaneseq
    %v909 = vshrl.u32 %v908, 7
    %v910 = vsub.s32 0, %v909
    %v911 = vrot.slane %v907, %v910
    %v912 = vlaneseq
    %v913 = vshrl.u32 %v912, 7
    %v914 = vsub.s32 1, %v913
    %v915 = vrot.slane %v907, %v914
    %v916 = vlaneseq
    %v917 = vshrl.u32 %v916, 7
    %v918 = vsub.s32 2, %v917
    %v919 = vrot.slane %v907, %v918
    %v920 = vlaneseq
    %v921 = vshrl.u32 %v920, 7
    %v922 = vsub.s32 3, %v921
    %v923 = vrot.slane %v907, %v922
    %v924 = vlaneseq
    %v925 = vshrl.u32 %v924, 7
    %v926 = vsub.s32 4, %v925
    %v927 = vrot.slane %v907, %v926
    %v928 = vlaneseq
    %v929 = vshrl.u32 %v928, 7
    %v930 = vsub.s32 5, %v929
    %v931 = vrot.slane %v907, %v930
    %v932 = vlaneseq
    %v933 = vshrl.u32 %v932, 7
    %v934 = vsub.s32 6, %v933
    %v935 = vrot.slane %v907, %v934
    %v936 = vlaneseq
    %v937 = vshrl.u32 %v936, 7
    %v938 = vsub.s32 7, %v937
    %v939 = vrot.slane %v907, %v938
    %vm940 = vcmp.eq.s32.totalorder %v911, %v73
    %vm941 = vcmp.eq.s32.totalorder %v915, %v73
    %vm942 = vcmp.eq.s32.totalorder %v919, %v73
    %vm943 = vcmp.eq.s32.totalorder %v923, %v73
    %vm944 = vcmp.eq.s32.totalorder %v927, %v73
    %vm945 = vcmp.eq.s32.totalorder %v931, %v73
    %vm946 = vcmp.eq.s32.totalorder %v935, %v73
    %vm947 = vcmp.eq.s32.totalorder %v939, %v73
    %v948 = vsel %vm940, 1, 0
    %v949 = vsel %vm941, 1, 0
    %v950 = vsel %vm942, 1, 0
    %v951 = vsel %vm943, 1, 0
    %v952 = vsel %vm944, 1, 0
    %v953 = vsel %vm945, 1, 0
    %v954 = vsel %vm946, 1, 0
    %v955 = vsel %vm947, 1, 0
    %v956 = vcvt.s32.f32 %v948
    %v957 = vcvt.s32.f32 %v949
    %v958 = vcvt.s32.f32 %v950
    %v959 = vcvt.s32.f32 %v951
    %v960 = vcvt.s32.f32 %v952
    %v961 = vcvt.s32.f32 %v953
    %v962 = vcvt.s32.f32 %v954
    %v963 = vcvt.s32.f32 %v955
    %v964 = vpack.c.bf16 %v956, %v956
    %v965 = vpack.c.bf16 %v957, %v957
    %v966 = vpack.c.bf16 %v958, %v958
    %v967 = vpack.c.bf16 %v959, %v959
    %v968 = vpack.c.bf16 %v960, %v960
    %v969 = vpack.c.bf16 %v961, %v961
    %v970 = vpack.c.bf16 %v962, %v962
    %v971 = vpack.c.bf16 %v963, %v963
    %v972 = vld [vmem:[#allocation2] sm:$0xf]
    %973 = vmatprep.subr.bf16.mxu0 0
    %974 = vmatpush1.bf16.msra.mxu0 %v850
    %975 = vmatprep.subr.bf16.mxu0 0
    %976 = vmatpush1.bf16.msra.mxu0 %v849
    %977 = vmatprep.subr.bf16.mxu0 0
    %978 = vmatpush1.bf16.msra.mxu0 %v848
    %979 = vmatprep.subr.bf16.mxu0 0
    %980 = vmatpush1.bf16.msra.mxu0 %v847
    %981 = vmatprep.subr.bf16.mxu0 0
    %982 = vmatpush1.bf16.msra.mxu0 %v846
    %983 = vmatprep.subr.bf16.mxu0 0
    %984 = vmatpush1.bf16.msra.mxu0 %v845
    %985 = vmatprep.subr.bf16.mxu0 0
    %986 = vmatpush1.bf16.msra.mxu0 %v844
    %987 = vmatprep.subr.bf16.mxu0 0
    %988 = vmatpush1.bf16.msra.mxu0 %v843
    %989 = vmatprep.subr.bf16.mxu0 0
    %990 = vmatpush2.bf16.msra.mxu0 %v858
    %991 = vmatprep.subr.bf16.mxu0 0
    %992 = vmatpush2.bf16.msra.mxu0 %v857
    %993 = vmatprep.subr.bf16.mxu0 0
    %994 = vmatpush2.bf16.msra.mxu0 %v856
    %995 = vmatprep.subr.bf16.mxu0 0
    %996 = vmatpush2.bf16.msra.mxu0 %v855
    %997 = vmatprep.subr.bf16.mxu0 0
    %998 = vmatpush2.bf16.msra.mxu0 %v854
    %999 = vmatprep.subr.bf16.mxu0 0
    %1000 = vmatpush2.bf16.msra.mxu0 %v853
    %1001 = vmatprep.subr.bf16.mxu0 0
    %1002 = vmatpush2.bf16.msra.mxu0 %v852
    %1003 = vmatprep.subr.bf16.mxu0 0
    %1004 = vmatpush2.bf16.msra.mxu0 %v851
    %1005 = vmatprep.mubr.bf16.mxu0 %v965
    %1006 = vmatmul.mubr.bf16.gmra.mxu0 %v964
    %v1007 = vpop.f32.mrf.mxu0
    %v1008 = vadd.f32 0.0, %v1007
    %v1009 = vpop.f32.mrf.mxu0
    %v1010 = vpop.f32.mrf.mxu0
    %v1011 = vpop.f32.mrf.mxu0
    %1012 = vdwg.mxu0
    %1013 = vmatprep.subr.bf16.mxu0 0
    %1014 = vmatpush1.bf16.msra.mxu0 %v866
    %1015 = vmatprep.subr.bf16.mxu0 0
    %1016 = vmatpush1.bf16.msra.mxu0 %v865
    %1017 = vmatprep.subr.bf16.mxu0 0
    %1018 = vmatpush1.bf16.msra.mxu0 %v864
    %1019 = vmatprep.subr.bf16.mxu0 0
    %1020 = vmatpush1.bf16.msra.mxu0 %v863
    %1021 = vmatprep.subr.bf16.mxu0 0
    %1022 = vmatpush1.bf16.msra.mxu0 %v862
    %1023 = vmatprep.subr.bf16.mxu0 0
    %1024 = vmatpush1.bf16.msra.mxu0 %v861
    %1025 = vmatprep.subr.bf16.mxu0 0
    %1026 = vmatpush1.bf16.msra.mxu0 %v860
    %1027 = vmatprep.subr.bf16.mxu0 0
    %1028 = vmatpush1.bf16.msra.mxu0 %v859
    %1029 = vmatprep.subr.bf16.mxu0 0
    %1030 = vmatpush2.bf16.msra.mxu0 %v874
    %1031 = vmatprep.subr.bf16.mxu0 0
    %1032 = vmatpush2.bf16.msra.mxu0 %v873
    %1033 = vmatprep.subr.bf16.mxu0 0
    %1034 = vmatpush2.bf16.msra.mxu0 %v872
    %1035 = vmatprep.subr.bf16.mxu0 0
    %1036 = vmatpush2.bf16.msra.mxu0 %v871
    %1037 = vmatprep.subr.bf16.mxu0 0
    %1038 = vmatpush2.bf16.msra.mxu0 %v870
    %1039 = vmatprep.subr.bf16.mxu0 0
    %1040 = vmatpush2.bf16.msra.mxu0 %v869
    %1041 = vmatprep.subr.bf16.mxu0 0
    %1042 = vmatpush2.bf16.msra.mxu0 %v868
    %1043 = vmatprep.subr.bf16.mxu0 0
    %1044 = vmatpush2.bf16.msra.mxu0 %v867
    %1045 = vmatprep.mubr.bf16.mxu0 %v967
    %1046 = vmatmul.mubr.bf16.gmra.mxu0 %v966
    %v1047 = vpop.f32.mrf.mxu0
    %v1048 = vadd.f32 %v1008, %v1047
    %v1049 = vpop.f32.mrf.mxu0
    %v1050 = vpop.f32.mrf.mxu0
    %v1051 = vpop.f32.mrf.mxu0
    %1052 = vdwg.mxu0
    %1053 = vmatprep.subr.bf16.mxu0 0
    %1054 = vmatpush1.bf16.msra.mxu0 %v882
    %1055 = vmatprep.subr.bf16.mxu0 0
    %1056 = vmatpush1.bf16.msra.mxu0 %v881
    %1057 = vmatprep.subr.bf16.mxu0 0
    %1058 = vmatpush1.bf16.msra.mxu0 %v880
    %1059 = vmatprep.subr.bf16.mxu0 0
    %1060 = vmatpush1.bf16.msra.mxu0 %v879
    %1061 = vmatprep.subr.bf16.mxu0 0
    %1062 = vmatpush1.bf16.msra.mxu0 %v878
    %1063 = vmatprep.subr.bf16.mxu0 0
    %1064 = vmatpush1.bf16.msra.mxu0 %v877
    %1065 = vmatprep.subr.bf16.mxu0 0
    %1066 = vmatpush1.bf16.msra.mxu0 %v876
    %1067 = vmatprep.subr.bf16.mxu0 0
    %1068 = vmatpush1.bf16.msra.mxu0 %v875
    %1069 = vmatprep.subr.bf16.mxu0 0
    %1070 = vmatpush2.bf16.msra.mxu0 %v890
    %1071 = vmatprep.subr.bf16.mxu0 0
    %1072 = vmatpush2.bf16.msra.mxu0 %v889
    %1073 = vmatprep.subr.bf16.mxu0 0
    %1074 = vmatpush2.bf16.msra.mxu0 %v888
    %1075 = vmatprep.subr.bf16.mxu0 0
    %1076 = vmatpush2.bf16.msra.mxu0 %v887
    %1077 = vmatprep.subr.bf16.mxu0 0
    %1078 = vmatpush2.bf16.msra.mxu0 %v886
    %1079 = vmatprep.subr.bf16.mxu0 0
    %1080 = vmatpush2.bf16.msra.mxu0 %v885
    %1081 = vmatprep.subr.bf16.mxu0 0
    %1082 = vmatpush2.bf16.msra.mxu0 %v884
    %1083 = vmatprep.subr.bf16.mxu0 0
    %1084 = vmatpush2.bf16.msra.mxu0 %v883
    %1085 = vmatprep.mubr.bf16.mxu0 %v969
    %1086 = vmatmul.mubr.bf16.gmra.mxu0 %v968
    %v1087 = vpop.f32.mrf.mxu0
    %v1088 = vadd.f32 %v1048, %v1087
    %v1089 = vpop.f32.mrf.mxu0
    %v1090 = vpop.f32.mrf.mxu0
    %v1091 = vpop.f32.mrf.mxu0
    %1092 = vdwg.mxu0
    %1093 = vmatprep.subr.bf16.mxu0 0
    %1094 = vmatpush1.bf16.msra.mxu0 %v898
    %1095 = vmatprep.subr.bf16.mxu0 0
    %1096 = vmatpush1.bf16.msra.mxu0 %v897
    %1097 = vmatprep.subr.bf16.mxu0 0
    %1098 = vmatpush1.bf16.msra.mxu0 %v896
    %1099 = vmatprep.subr.bf16.mxu0 0
    %1100 = vmatpush1.bf16.msra.mxu0 %v895
    %1101 = vmatprep.subr.bf16.mxu0 0
    %1102 = vmatpush1.bf16.msra.mxu0 %v894
    %1103 = vmatprep.subr.bf16.mxu0 0
    %1104 = vmatpush1.bf16.msra.mxu0 %v893
    %1105 = vmatprep.subr.bf16.mxu0 0
    %1106 = vmatpush1.bf16.msra.mxu0 %v892
    %1107 = vmatprep.subr.bf16.mxu0 0
    %1108 = vmatpush1.bf16.msra.mxu0 %v891
    %1109 = vmatprep.subr.bf16.mxu0 0
    %1110 = vmatpush2.bf16.msra.mxu0 %v906
    %1111 = vmatprep.subr.bf16.mxu0 0
    %1112 = vmatpush2.bf16.msra.mxu0 %v905
    %1113 = vmatprep.subr.bf16.mxu0 0
    %1114 = vmatpush2.bf16.msra.mxu0 %v904
    %1115 = vmatprep.subr.bf16.mxu0 0
    %1116 = vmatpush2.bf16.msra.mxu0 %v903
    %1117 = vmatprep.subr.bf16.mxu0 0
    %1118 = vmatpush2.bf16.msra.mxu0 %v902
    %1119 = vmatprep.subr.bf16.mxu0 0
    %1120 = vmatpush2.bf16.msra.mxu0 %v901
    %1121 = vmatprep.subr.bf16.mxu0 0
    %1122 = vmatpush2.bf16.msra.mxu0 %v900
    %1123 = vmatprep.subr.bf16.mxu0 0
    %1124 = vmatpush2.bf16.msra.mxu0 %v899
    %1125 = vmatprep.mubr.bf16.mxu0 %v971
    %1126 = vmatmul.mubr.bf16.gmra.mxu0 %v970
    %v1127 = vpop.f32.mrf.mxu0
    %v1128 = vadd.f32 %v1088, %v1127
    %v1129 = vpop.f32.mrf.mxu0
    %v1130 = vpop.f32.mrf.mxu0
    %v1131 = vpop.f32.mrf.mxu0
    %1132 = vdwg.mxu0
    %v1133 = vadd.f32 %v972, %v1128
    %vm1134 = vcmask 125952
    %1135 = vst.msk [vmem:[#allocation2] sm:$0xf] %vm1134, %v1133
    // Predicated region
    $region14: #{tpu_custom_call.1} parent=1 // pred_check
      _
    $region15: #{tpu_custom_call.1} parent=1 // pred_check_branch
      %1137 = sbr.rel (0) target = $region17
    $region16: #{tpu_custom_call.1} parent=1 // pred_region
      %s1139 = ssub.s32 64, 64
      %1140 = vsyncadd [#allocation3], %s1139
      %s1142 = sshll.u32 [#allocation2], 4
      %s1143 = int_to_ptr.vmem [resolvable:$true] %s1142
      %1145 = dma.vmem_to_hbm [thread:$0]  %s1143, 64, %s2, [#allocation3]
    $region17: #{tpu_custom_call.1} parent=1 // pred_fallthru
      _
    // Predicated region
    $region18: #{tpu_custom_call.1} parent=1 // pred_check
      _
    $region19: #{tpu_custom_call.1} parent=1 // pred_check_branch
      %1147 = sbr.rel (0) target = $region21
    $region20: #{tpu_custom_call.1} parent=1 // pred_region
      %1148 = dma.done [#allocation3], 64
    $region21: #{tpu_custom_call.1} parent=1 // pred_fallthru
      _
    %1149 = vsyncpa [#allocation3], 1

</llo_original>
